<compile_context>
chip_gen: v5e
topology: v5e:2x2
jax: 0.10.0
libtpu: 0.0.40
codegen_flags: <defaults>
</compile_context>

<pallas_src>
import functools

import jax
import jax.numpy as jnp
from jax.experimental import pallas as pl
from jax.experimental.pallas import tpu as pltpu

WIN_SIZE = 11
WIN_SIGMA = 1.5
K1, K2 = 0.01, 0.03
DATA_RANGE = 1.0
C1 = (K1 * DATA_RANGE) ** 2
C2 = (K2 * DATA_RANGE) ** 2


def _gaussian_1d(size=WIN_SIZE, sigma=WIN_SIGMA):
    coords = jnp.arange(size, dtype=jnp.float32) - size // 2
    g = jnp.exp(-(coords ** 2) / (2.0 * sigma ** 2))
    return g / jnp.sum(g)


def _filter_matrix(n_out, n_in, g1d):
    # Row i holds the 1-D Gaussian window starting at column i ("valid" conv).
    # TODO(synk): for large H/W, exploit the banded structure (tile the
    # contraction to the 11 relevant rows) instead of a dense matmul.
    m = jnp.zeros((n_out, n_in), jnp.float32)
    for i in range(n_out):
        m = m.at[i, i:i + g1d.shape[0]].set(g1d)
    return m


def _choose_cb(nc, h, w, wout):
    """Largest divisor of NC whose per-step working set stays small."""
    best = 1
    for cb in range(1, nc + 1):
        if nc % cb:
            continue
        lanes = cb * w
        stacked_bytes = 5 * h * lanes * 4          # biggest in-kernel temporary
        bd_bytes = lanes * (cb * wout) * 4         # block-diagonal GwT filter
        if lanes <= 2048 and stacked_bytes <= (6 << 20) and bd_bytes <= (6 << 20):
            best = cb
    return best


def _combined_loss_kernel(recon_ref, x_ref, ghbd_ref, gwtbd_ref, out_ref, *,
                          hout):
    # Lane-dense slab of CB channel images: (H, CB*W), lane index = c*W + w.
    r = recon_ref[0].astype(jnp.float32)
    x = x_ref[0].astype(jnp.float32)

    # MSE / L1 partial sums (VPU elementwise + one cross-lane reduce per step).
    diff = r - x
    sq_err = jnp.sum(diff * diff)
    abs_err = jnp.sum(jnp.abs(diff))

    # SSIM on the [0, 1]-rescaled images.
    r01 = (r + 1.0) * 0.5
    x01 = (x + 1.0) * 0.5

    # Stack the 5 products along the sublane axis -> one slab of (5*H, CB*W).
    stacked = jnp.concatenate(
        [r01, x01, r01 * r01, x01 * x01, r01 * x01], axis=0)

    # Separable 11x11 Gaussian "valid" conv over ALL products & channels as
    # two MXU matmuls: 5-block-diag Gh on the left, CB-block-diag GwT on the
    # right.
    t = jnp.dot(ghbd_ref[...], stacked,
                preferred_element_type=jnp.float32)       # (5*Hout, CB*W)
    f = jnp.dot(t, gwtbd_ref[...],
                preferred_element_type=jnp.float32)       # (5*Hout, CB*Wout)

    mu1 = f[0 * hout:1 * hout]
    mu2 = f[1 * hout:2 * hout]
    e11 = f[2 * hout:3 * hout]
    e22 = f[3 * hout:4 * hout]
    e12 = f[4 * hout:5 * hout]

    mu1_sq = mu1 * mu1
    mu2_sq = mu2 * mu2
    mu1_mu2 = mu1 * mu2
    sigma1_sq = e11 - mu1_sq
    sigma2_sq = e22 - mu2_sq
    sigma12 = e12 - mu1_mu2

    # Fused SSIM map: one division instead of two.
    num = (2.0 * mu1_mu2 + C1) * (2.0 * sigma12 + C2)
    den = (mu1_sq + mu2_sq + C1) * (sigma1_sq + sigma2_sq + C2)
    ssim_sum = jnp.sum(num / den)

    # Lane-dense per-step partials: lane 0 = sum sq err, 1 = sum abs err,
    # 2 = sum of SSIM map values. No cross-step state -> "parallel" grid.
    lane = jax.lax.broadcasted_iota(jnp.int32, (1, 128), 1)
    out_ref[...] = (jnp.where(lane == 0, sq_err, 0.0)
                    + jnp.where(lane == 1, abs_err, 0.0)
                    + jnp.where(lane == 2, ssim_sum, 0.0))


def combined_loss(recon, x, alpha=0.5, beta=0.3, gamma=0.2):
    """Pallas TPU implementation of CombinedLoss.forward(recon, x)."""
    assert recon.shape == x.shape and recon.ndim == 4
    N, C, H, W = x.shape
    NC = N * C
    Hout, Wout = H - WIN_SIZE + 1, W - WIN_SIZE + 1
    assert Hout > 0 and Wout > 0, "image must be larger than the SSIM window"

    CB = _choose_cb(NC, H, W, Wout)
    NB = NC // CB

    g1d = _gaussian_1d()
    gh = _filter_matrix(Hout, H, g1d)                       # (Hout, H)
    gwt = _filter_matrix(Wout, W, g1d).T                    # (W, Wout)
    gh_bd = jnp.kron(jnp.eye(5, dtype=jnp.float32), gh)     # (5*Hout, 5*H)
    gwt_bd = jnp.kron(jnp.eye(CB, dtype=jnp.float32), gwt)  # (CB*W, CB*Wout)

    # Lane-dense packing: (NB, CB, H, W) -> (NB, H, CB*W); keep original dtype
    # (kernel casts to f32), so bf16 inputs DMA half the bytes.
    def pack(a):
        return (a.reshape(NB, CB, H, W)
                 .transpose(0, 2, 1, 3)
                 .reshape(NB, H, CB * W))

    r_p = pack(recon)
    x_p = pack(x)

    kernel = functools.partial(_combined_loss_kernel, hout=Hout)

    partials = pl.pallas_call(
        kernel,
        out_shape=jax.ShapeDtypeStruct((NB, 128), jnp.float32),
        grid=(NB,),
        in_specs=[
            pl.BlockSpec((1, H, CB * W), lambda i: (i, 0, 0)),
            pl.BlockSpec((1, H, CB * W), lambda i: (i, 0, 0)),
            pl.BlockSpec((5 * Hout, 5 * H), lambda i: (0, 0)),
            pl.BlockSpec((CB * W, CB * Wout), lambda i: (0, 0)),
        ],
        out_specs=pl.BlockSpec((1, 128), lambda i: (i, 0)),
        compiler_params=pltpu.CompilerParams(
            dimension_semantics=("parallel",)),
    )(r_p, x_p, gh_bd, gwt_bd)

    # Final weighted combine in plain JAX (tiny).
    sums = jnp.sum(partials, axis=0)
    total = jnp.float32(NC * H * W)
    m = sums[0] / total
    l = sums[1] / total
    s = sums[2] / jnp.float32(NC * Hout * Wout)
    return alpha * m + beta * l + gamma * (1.0 - s)


def _reference_loss(recon, x, alpha, beta, gamma):
    # Pure-JAX reference (same math, vectorized) for validation.
    N, C, H, W = x.shape
    Hout, Wout = H - WIN_SIZE + 1, W - WIN_SIZE + 1
    g1d = _gaussian_1d()
    gh = _filter_matrix(Hout, H, g1d)
    gw = _filter_matrix(Wout, W, g1d)

    m = jnp.mean((recon - x) ** 2)
    l = jnp.mean(jnp.abs(recon - x))
    x01 = (x + 1.0) / 2.0
    r01 = (recon + 1.0) / 2.0

    def gfilt(img):
        t = jnp.einsum('oh,nchw->ncow', gh, img)
        return jnp.einsum('ncow,pw->ncop', t, gw)

    mu1, mu2 = gfilt(r01), gfilt(x01)
    s1 = gfilt(r01 * r01) - mu1 ** 2
    s2 = gfilt(x01 * x01) - mu2 ** 2
    s12 = gfilt(r01 * x01) - mu1 * mu2
    cs_map = (2 * s12 + C2) / (s1 + s2 + C2)
    ssim_map = ((2 * mu1 * mu2 + C1) / (mu1 ** 2 + mu2 ** 2 + C1)) * cs_map
    s = jnp.mean(ssim_map.reshape(N, C, -1).mean(-1))
    return alpha * m + beta * l + gamma * (1.0 - s)


if __name__ == "__main__":
    key = jax.random.PRNGKey(0)
    k1, k2 = jax.random.split(key)
    # tanh-range images, as implied by the (x + 1) / 2 rescale in the module.
    x = jax.random.uniform(k1, (2, 4, 16, 16), jnp.float32, -1.0, 1.0)
    recon = jax.random.uniform(k2, (2, 4, 16, 16), jnp.float32, -1.0, 1.0)

    loss = combined_loss(recon, x)
    jax.block_until_ready(loss)

    ref = _reference_loss(recon, x, 0.5, 0.3, 0.2)
    assert abs(float(loss) - float(ref)) < 2e-4, (float(loss), float(ref))
    print("KERNEL_OK")
</pallas_src>

<mosaic_0001>
module attributes {stable_mosaic.version = 11 : i64} {
  func.func @_combined_loss_kernel(%arg0: i32, %arg1: memref<1x16x128xf32, #tpu.memory_space<vmem>>, %arg2: memref<1x16x128xf32, #tpu.memory_space<vmem>>, %arg3: memref<30x80xf32, #tpu.memory_space<vmem>>, %arg4: memref<128x48xf32, #tpu.memory_space<vmem>>, %arg5: memref<1x128xf32, #tpu.memory_space<vmem>>) attributes {dimension_semantics = [#tpu.dimension_semantics<parallel>], iteration_bounds = array<i64: 1>, scalar_prefetch = 0 : i64, scratch_operands = 0 : i64, tpu.core_type = #tpu.core_type<tc>, window_params = [{transform_indices = @transform_0, window_bounds = array<i64: 1, 16, 128>}, {transform_indices = @transform_1, window_bounds = array<i64: 1, 16, 128>}, {pipeline_mode = #tpu.pipeline_mode<synchronous>, transform_indices = @transform_2, window_bounds = array<i64: 30, 80>}, {pipeline_mode = #tpu.pipeline_mode<synchronous>, transform_indices = @transform_3, window_bounds = array<i64: 128, 48>}, {transform_indices = @transform_4, window_bounds = array<i64: 1, 128>}]} {
    %c0 = arith.constant 0 : index
    %c0_0 = arith.constant 0 : index
    %c0_1 = arith.constant 0 : index
    %0 = vector.load %arg1[%c0, %c0_0, %c0_1] : memref<1x16x128xf32, #tpu.memory_space<vmem>>, vector<1x16x128xf32>
    %1 = vector.shape_cast %0 : vector<1x16x128xf32> to vector<16x128xf32>
    %c0_2 = arith.constant 0 : index
    %c0_3 = arith.constant 0 : index
    %c0_4 = arith.constant 0 : index
    %2 = vector.load %arg2[%c0_2, %c0_3, %c0_4] : memref<1x16x128xf32, #tpu.memory_space<vmem>>, vector<1x16x128xf32>
    %3 = vector.shape_cast %2 : vector<1x16x128xf32> to vector<16x128xf32>
    %4 = arith.subf %1, %3 : vector<16x128xf32>
    %5 = arith.mulf %4, %4 : vector<16x128xf32>
    %6 = vector.shape_cast %5 : vector<16x128xf32> to vector<1x16x128xf32>
    %cst = arith.constant dense<0.000000e+00> : vector<1xf32>
    %7 = vector.multi_reduction <add>, %6, %cst [1, 2] : vector<1x16x128xf32> to vector<1xf32>
    %8 = vector.shape_cast %7 : vector<1xf32> to vector<1x1x1xf32>
    %9 = vector.extract %8[0, 0, 0] : f32 from vector<1x1x1xf32>
    %10 = math.absf %4 : vector<16x128xf32>
    %11 = vector.shape_cast %10 : vector<16x128xf32> to vector<1x16x128xf32>
    %cst_5 = arith.constant dense<0.000000e+00> : vector<1xf32>
    %12 = vector.multi_reduction <add>, %11, %cst_5 [1, 2] : vector<1x16x128xf32> to vector<1xf32>
    %13 = vector.shape_cast %12 : vector<1xf32> to vector<1x1x1xf32>
    %14 = vector.extract %13[0, 0, 0] : f32 from vector<1x1x1xf32>
    %cst_6 = arith.constant 1.000000e+00 : f32
    %15 = vector.broadcast %cst_6 : f32 to vector<16x128xf32>
    %16 = arith.addf %1, %15 : vector<16x128xf32>
    %cst_7 = arith.constant 5.000000e-01 : f32
    %17 = vector.broadcast %cst_7 : f32 to vector<16x128xf32>
    %18 = arith.mulf %16, %17 : vector<16x128xf32>
    %cst_8 = arith.constant 1.000000e+00 : f32
    %19 = vector.broadcast %cst_8 : f32 to vector<16x128xf32>
    %20 = arith.addf %3, %19 : vector<16x128xf32>
    %cst_9 = arith.constant 5.000000e-01 : f32
    %21 = vector.broadcast %cst_9 : f32 to vector<16x128xf32>
    %22 = arith.mulf %20, %21 : vector<16x128xf32>
    %23 = arith.mulf %18, %18 : vector<16x128xf32>
    %24 = arith.mulf %22, %22 : vector<16x128xf32>
    %25 = arith.mulf %18, %22 : vector<16x128xf32>
    %26 = tpu.concatenate %18, %22, %23, %24, %25 in 0 : vector<16x128xf32>, vector<16x128xf32>, vector<16x128xf32>, vector<16x128xf32>, vector<16x128xf32> -> vector<80x128xf32>
    %c0_10 = arith.constant 0 : index
    %c0_11 = arith.constant 0 : index
    %27 = vector.load %arg3[%c0_10, %c0_11] : memref<30x80xf32, #tpu.memory_space<vmem>>, vector<30x80xf32>
    %cst_12 = arith.constant dense<0.000000e+00> : vector<30x128xf32>
    %28 = tpu.matmul %27, %26, %cst_12 {dimension_numbers = #tpu.dot_dimension_numbers<[1], [0], [0], [1], [0, 0, 1, 1], [], []>} : vector<30x80xf32>, vector<80x128xf32>, vector<30x128xf32> -> vector<30x128xf32>
    %c0_13 = arith.constant 0 : index
    %c0_14 = arith.constant 0 : index
    %29 = vector.load %arg4[%c0_13, %c0_14] : memref<128x48xf32, #tpu.memory_space<vmem>>, vector<128x48xf32>
    %cst_15 = arith.constant dense<0.000000e+00> : vector<30x48xf32>
    %30 = tpu.matmul %28, %29, %cst_15 {dimension_numbers = #tpu.dot_dimension_numbers<[1], [0], [0], [1], [0, 0, 1, 1], [], []>} : vector<30x128xf32>, vector<128x48xf32>, vector<30x48xf32> -> vector<30x48xf32>
    %31 = vector.extract_strided_slice %30 {offsets = [0, 0], sizes = [6, 48], strides = [1, 1]} : vector<30x48xf32> to vector<6x48xf32>
    %32 = vector.extract_strided_slice %30 {offsets = [6, 0], sizes = [6, 48], strides = [1, 1]} : vector<30x48xf32> to vector<6x48xf32>
    %33 = vector.extract_strided_slice %30 {offsets = [12, 0], sizes = [6, 48], strides = [1, 1]} : vector<30x48xf32> to vector<6x48xf32>
    %34 = vector.extract_strided_slice %30 {offsets = [18, 0], sizes = [6, 48], strides = [1, 1]} : vector<30x48xf32> to vector<6x48xf32>
    %35 = vector.extract_strided_slice %30 {offsets = [24, 0], sizes = [6, 48], strides = [1, 1]} : vector<30x48xf32> to vector<6x48xf32>
    %36 = arith.mulf %31, %31 : vector<6x48xf32>
    %37 = arith.mulf %32, %32 : vector<6x48xf32>
    %38 = arith.mulf %31, %32 : vector<6x48xf32>
    %39 = arith.subf %33, %36 : vector<6x48xf32>
    %40 = arith.subf %34, %37 : vector<6x48xf32>
    %41 = arith.subf %35, %38 : vector<6x48xf32>
    %cst_16 = arith.constant 2.000000e+00 : f32
    %42 = vector.broadcast %cst_16 : f32 to vector<6x48xf32>
    %43 = arith.mulf %42, %38 : vector<6x48xf32>
    %cst_17 = arith.constant 9.99999974E-5 : f32
    %44 = vector.broadcast %cst_17 : f32 to vector<6x48xf32>
    %45 = arith.addf %43, %44 : vector<6x48xf32>
    %cst_18 = arith.constant 2.000000e+00 : f32
    %46 = vector.broadcast %cst_18 : f32 to vector<6x48xf32>
    %47 = arith.mulf %46, %41 : vector<6x48xf32>
    %cst_19 = arith.constant 8.99999984E-4 : f32
    %48 = vector.broadcast %cst_19 : f32 to vector<6x48xf32>
    %49 = arith.addf %47, %48 : vector<6x48xf32>
    %50 = arith.mulf %45, %49 : vector<6x48xf32>
    %51 = arith.addf %36, %37 : vector<6x48xf32>
    %cst_20 = arith.constant 9.99999974E-5 : f32
    %52 = vector.broadcast %cst_20 : f32 to vector<6x48xf32>
    %53 = arith.addf %51, %52 : vector<6x48xf32>
    %54 = arith.addf %39, %40 : vector<6x48xf32>
    %cst_21 = arith.constant 8.99999984E-4 : f32
    %55 = vector.broadcast %cst_21 : f32 to vector<6x48xf32>
    %56 = arith.addf %54, %55 : vector<6x48xf32>
    %57 = arith.mulf %53, %56 : vector<6x48xf32>
    %58 = arith.divf %50, %57 : vector<6x48xf32>
    %59 = vector.shape_cast %58 : vector<6x48xf32> to vector<1x6x48xf32>
    %cst_22 = arith.constant dense<0.000000e+00> : vector<1xf32>
    %60 = vector.multi_reduction <add>, %59, %cst_22 [1, 2] : vector<1x6x48xf32> to vector<1xf32>
    %61 = vector.shape_cast %60 : vector<1xf32> to vector<1x1x1xf32>
    %62 = vector.extract %61[0, 0, 0] : f32 from vector<1x1x1xf32>
    %63 = tpu.iota {dimensions = array<i32: 1>} : vector<1x128xi32>
    %c0_i32 = arith.constant 0 : i32
    %64 = vector.broadcast %c0_i32 : i32 to vector<1x128xi32>
    %65 = arith.cmpi eq, %63, %64 : vector<1x128xi32>
    %cst_23 = arith.constant 0.000000e+00 : f32
    %66 = vector.broadcast %9 : f32 to vector<1x128xf32>
    %67 = vector.broadcast %cst_23 : f32 to vector<1x128xf32>
    %68 = arith.select %65, %66, %67 : vector<1x128xi1>, vector<1x128xf32>
    %c1_i32 = arith.constant 1 : i32
    %69 = vector.broadcast %c1_i32 : i32 to vector<1x128xi32>
    %70 = arith.cmpi eq, %63, %69 : vector<1x128xi32>
    %cst_24 = arith.constant 0.000000e+00 : f32
    %71 = vector.broadcast %14 : f32 to vector<1x128xf32>
    %72 = vector.broadcast %cst_24 : f32 to vector<1x128xf32>
    %73 = arith.select %70, %71, %72 : vector<1x128xi1>, vector<1x128xf32>
    %74 = arith.addf %68, %73 : vector<1x128xf32>
    %c2_i32 = arith.constant 2 : i32
    %75 = vector.broadcast %c2_i32 : i32 to vector<1x128xi32>
    %76 = arith.cmpi eq, %63, %75 : vector<1x128xi32>
    %cst_25 = arith.constant 0.000000e+00 : f32
    %77 = vector.broadcast %62 : f32 to vector<1x128xf32>
    %78 = vector.broadcast %cst_25 : f32 to vector<1x128xf32>
    %79 = arith.select %76, %77, %78 : vector<1x128xi1>, vector<1x128xf32>
    %80 = arith.addf %74, %79 : vector<1x128xf32>
    %c0_26 = arith.constant 0 : index
    %c0_27 = arith.constant 0 : index
    %81 = vector.load %arg5[%c0_26, %c0_27] : memref<1x128xf32, #tpu.memory_space<vmem>>, vector<1x128xf32>
    tpu.vector_store %arg5[%c0_26, %c0_27], %80 {strides = array<i32>} : memref<1x128xf32, #tpu.memory_space<vmem>>, vector<1x128xf32>,
    return
  }
  func.func @transform_0(%arg0: i32) -> (i32, i32, i32) {
    %c0_i32 = arith.constant 0 : i32
    %c0_i32_0 = arith.constant 0 : i32
    %c0_i32_1 = arith.constant 0 : i32
    return %arg0, %c0_i32, %c0_i32_0 : i32, i32, i32
  }
  func.func @transform_1(%arg0: i32) -> (i32, i32, i32) {
    %c0_i32 = arith.constant 0 : i32
    %c0_i32_0 = arith.constant 0 : i32
    %c0_i32_1 = arith.constant 0 : i32
    return %arg0, %c0_i32, %c0_i32_0 : i32, i32, i32
  }
  func.func @transform_2(%arg0: i32) -> (i32, i32) {
    %c0_i32 = arith.constant 0 : i32
    %c0_i32_0 = arith.constant 0 : i32
    %c0_i32_1 = arith.constant 0 : i32
    return %c0_i32, %c0_i32_0 : i32, i32
  }
  func.func @transform_3(%arg0: i32) -> (i32, i32) {
    %c0_i32 = arith.constant 0 : i32
    %c0_i32_0 = arith.constant 0 : i32
    %c0_i32_1 = arith.constant 0 : i32
    return %c0_i32, %c0_i32_0 : i32, i32
  }
  func.func @transform_4(%arg0: i32) -> (i32, i32) {
    %c0_i32 = arith.constant 0 : i32
    %c0_i32_0 = arith.constant 0 : i32
    return %arg0, %c0_i32 : i32, i32
  }
}

</mosaic_0001>

<llo_original>
// kernel: tpu_custom_call.1
$region0: #{tpu_custom_call.1}
  #allocation0 [shape = 'u32[]', space=smem, size = 0x4, offset = 0x4, fixed_abs, tag = 'smem constant byte address 0x4 - core index']
  #allocation1 [shape = 'u32[72,128]{1,0:T(1,128)}', space=vmem, size = 0x9000, scoped, tag = 'internal scratch']
  %s0 = inlined_call_operand.vmem [shape: f32[1,16,128], index: 0, kind: input, shape index: {}]
  %s1 = inlined_call_operand.vmem [shape: f32[1,16,128], index: 1, kind: input, shape index: {}]
  %s2 = inlined_call_operand.vmem [shape: f32[30,80], index: 2, kind: input, shape index: {}]
  %s3 = inlined_call_operand.vmem [shape: f32[128,48], index: 3, kind: input, shape index: {}]
  %s4 = inlined_call_operand.hbm [shape: f32[1,128], index: 4, kind: output, shape index: {}]
  %s5 = sld [smem:[#allocation0]]
  $region26: #{tpu_custom_call.1} parent=0
    _
  %s7 = ssub.s32 1, %s5
  %s8 = scalar_select 0, %s7, %s5
  $region1: #{tpu_custom_call.1} parent=0
    #allocation2 [shape = 'u8[512]{0}', space=vmem, size = 0x400, scoped, tag = 'output window, operand 0, single buffered']
    #allocation3 [shape = 's32[1]{0}', space=sflag, size = 0x4, scoped, tag = 'scoped memory for tpu_custom_call.1']
    %9 = vsyncpa [#allocation3], 0
    // Predicated region
    $region2: #{tpu_custom_call.1} parent=1 // pred_check
      _
    $region3: #{tpu_custom_call.1} parent=1 // pred_check_branch
      %11 = sbr.rel (0) target = $region5
    $region4: #{tpu_custom_call.1} parent=1 // pred_region
      _
    $region5: #{tpu_custom_call.1} parent=1 // pred_fallthru
      _
    // Predicated region
    $region6: #{tpu_custom_call.1} parent=1 // pred_check
      _
    $region7: #{tpu_custom_call.1} parent=1 // pred_check_branch
      %13 = sbr.rel (0) target = $region9
    $region8: #{tpu_custom_call.1} parent=1 // pred_region
      _
    $region9: #{tpu_custom_call.1} parent=1 // pred_fallthru
      _
    // Predicated region
    $region10: #{tpu_custom_call.1} parent=1 // pred_check
      _
    $region11: #{tpu_custom_call.1} parent=1 // pred_check_branch
      %15 = sbr.rel (0) target = $region13
    $region12: #{tpu_custom_call.1} parent=1 // pred_region
      _
    $region13: #{tpu_custom_call.1} parent=1 // pred_fallthru
      _
    // Predicated region
    $region14: #{tpu_custom_call.1} parent=1 // pred_check
      _
    $region15: #{tpu_custom_call.1} parent=1 // pred_check_branch
      %17 = sbr.rel (0) target = $region17
    $region16: #{tpu_custom_call.1} parent=1 // pred_region
      _
    $region17: #{tpu_custom_call.1} parent=1 // pred_fallthru
      _
    %v18 = vld [vmem:[%s0] sm:$0xff]
    %v19 = vld [vmem:[%s0 + $0x8] sm:$0xff]
    %v20 = vld [vmem:[%s1] sm:$0xff]
    %v21 = vld [vmem:[%s1 + $0x8] sm:$0xff]
    %v22 = vsub.f32 %v18, %v20
    %v23 = vsub.f32 %v19, %v21
    %v24 = vmul.f32 %v22, %v22
    %v25 = vmul.f32 %v23, %v23
    %v26 = vadd.f32 %v24, %v25
    %27 = vadd.xlane.f32.xlu0 %v26
    %v28 = vpop.xlane.xlu0 %27
    %v29 = vrot.slane %v28, 4
    %v30 = vadd.f32 %v28, %v29
    %v31 = vrot.slane %v30, 2
    %v32 = vadd.f32 %v30, %v31
    %v33 = vrot.slane %v32, 1
    %v34 = vadd.f32 %v32, %v33
    %s35 = vtos %v34
    %v36 = vand.u32 2147483647, %v22
    %v37 = vand.u32 2147483647, %v23
    %v38 = vadd.f32 %v36, %v37
    %39 = vadd.xlane.f32.xlu0 %v38
    %v40 = vpop.xlane.xlu0 %39
    %v41 = vrot.slane %v40, 4
    %v42 = vadd.f32 %v40, %v41
    %v43 = vrot.slane %v42, 2
    %v44 = vadd.f32 %v42, %v43
    %v45 = vrot.slane %v44, 1
    %v46 = vadd.f32 %v44, %v45
    %s47 = vtos %v46
    %v48 = vadd.f32 %v18, 1.0
    %v49 = vadd.f32 %v19, 1.0
    %v50 = vmul.f32 %v48, 0.5
    %v51 = vmul.f32 %v49, 0.5
    %v52 = vadd.f32 %v20, 1.0
    %v53 = vadd.f32 %v21, 1.0
    %v54 = vmul.f32 %v52, 0.5
    %v55 = vmul.f32 %v53, 0.5
    %v56 = vmul.f32 %v50, %v50
    %v57 = vmul.f32 %v51, %v51
    %v58 = vmul.f32 %v54, %v54
    %v59 = vmul.f32 %v55, %v55
    %v60 = vmul.f32 %v50, %v54
    %v61 = vmul.f32 %v51, %v55
    %v62 = vld [vmem:[%s2] sm:$0xff]
    %v63 = vld [vmem:[%s2 + $0x8] sm:$0xff]
    %v64 = vld [vmem:[%s2 + $0x10] sm:$0xff]
    %v65 = vld [vmem:[%s2 + $0x18] sm:$0x3f]
    %vm66 = vcmask 654336
    %v68 = vsel %vm66, %v62, 0
    %v71 = vsel %vm66, %v63, 0
    %v74 = vsel %vm66, %v64, 0
    %v77 = vsel %vm66, %v65, 0
    %79 = vmatpush.msra.mxu0 0.0
    %80 = vmatpush.msra.mxu0 0.0
    %81 = vmatpush.msra.mxu0 0.0
    %82 = vmatpush.msra.mxu0 0.0
    %83 = vmatpush.msra.mxu0 0.0
    %84 = vmatpush.msra.mxu0 0.0
    %85 = vmatpush.msra.mxu0 %v61
    %86 = vmatpush.msra.mxu0 %v60
    %87 = vmatpush.msra.mxu0 %v59
    %88 = vmatpush.msra.mxu0 %v58
    %89 = vmatpush.msra.mxu0 %v57
    %90 = vmatpush.msra.mxu0 %v56
    %91 = vmatpush.msra.mxu0 %v55
    %92 = vmatpush.msra.mxu0 %v54
    %93 = vmatpush.msra.mxu0 %v51
    %94 = vmatpush.msra.mxu0 %v50
    %95 = vmatmul.f32.gmra.mxu0 %v68
    %v96 = vpop.f32.mrf.mxu0
    %v97 = vadd.f32 0.0, %v96
    %98 = vmatmul.f32.gmra.mxu0 %v71
    %v99 = vpop.f32.mrf.mxu0
    %v100 = vadd.f32 0.0, %v99
    %101 = vmatmul.f32.gmra.mxu0 %v74
    %v102 = vpop.f32.mrf.mxu0
    %v103 = vadd.f32 0.0, %v102
    %104 = vmatmul.f32.gmra.mxu0 %v77
    %v105 = vpop.f32.mrf.mxu0
    %v106 = vadd.f32 0.0, %v105
    %107 = vdwg.mxu0
    %v108 = vld [vmem:[%s3] sm:$0xff]
    %v109 = vld [vmem:[%s3 + $0x8] sm:$0xff]
    %v110 = vld [vmem:[%s3 + $0x10] sm:$0xff]
    %v111 = vld [vmem:[%s3 + $0x18] sm:$0xff]
    %v112 = vld [vmem:[%s3 + $0x20] sm:$0xff]
    %v113 = vld [vmem:[%s3 + $0x28] sm:$0xff]
    %v114 = vld [vmem:[%s3 + $0x30] sm:$0xff]
    %v115 = vld [vmem:[%s3 + $0x38] sm:$0xff]
    %v116 = vld [vmem:[%s3 + $0x40] sm:$0xff]
    %v117 = vld [vmem:[%s3 + $0x48] sm:$0xff]
    %v118 = vld [vmem:[%s3 + $0x50] sm:$0xff]
    %v119 = vld [vmem:[%s3 + $0x58] sm:$0xff]
    %v120 = vld [vmem:[%s3 + $0x60] sm:$0xff]
    %v121 = vld [vmem:[%s3 + $0x68] sm:$0xff]
    %v122 = vld [vmem:[%s3 + $0x70] sm:$0xff]
    %v123 = vld [vmem:[%s3 + $0x78] sm:$0xff]
    %124 = vmatpush.msra.mxu0 %v123
    %125 = vmatpush.msra.mxu0 %v122
    %126 = vmatpush.msra.mxu0 %v121
    %127 = vmatpush.msra.mxu0 %v120
    %128 = vmatpush.msra.mxu0 %v119
    %129 = vmatpush.msra.mxu0 %v118
    %130 = vmatpush.msra.mxu0 %v117
    %131 = vmatpush.msra.mxu0 %v116
    %132 = vmatpush.msra.mxu0 %v115
    %133 = vmatpush.msra.mxu0 %v114
    %134 = vmatpush.msra.mxu0 %v113
    %135 = vmatpush.msra.mxu0 %v112
    %136 = vmatpush.msra.mxu0 %v111
    %137 = vmatpush.msra.mxu0 %v110
    %138 = vmatpush.msra.mxu0 %v109
    %139 = vmatpush.msra.mxu0 %v108
    %140 = vmatmul.f32.gmra.mxu0 %v97
    %v141 = vpop.f32.mrf.mxu0
    %v142 = vadd.f32 0.0, %v141
    %143 = vmatmul.f32.gmra.mxu0 %v100
    %v144 = vpop.f32.mrf.mxu0
    %v145 = vadd.f32 0.0, %v144
    %146 = vmatmul.f32.gmra.mxu0 %v103
    %v147 = vpop.f32.mrf.mxu0
    %v148 = vadd.f32 0.0, %v147
    %149 = vmatmul.f32.gmra.mxu0 %v106
    %v150 = vpop.f32.mrf.mxu0
    %v151 = vadd.f32 0.0, %v150
    %152 = vdwg.mxu0
    %v153 = vmul.f32 %v142, %v142
    %v154 = vmul.f32 %v145, %v145
    %vm157 = vcmask 1041408
    %v158 = vrot.slane %v142, 6
    %v159 = vrot.slane %v145, 6
    %v160 = vsel %vm157, %v158, %v159
    %v162 = vmul.f32 %v142, %v160
    %v164 = vrot.slane %v153, 4
    %v166 = vsub.f32 %v145, %v164
    %v167 = vsub.f32 %v148, %v164
    %vm169 = vcmask 1043456
    %v170 = vrot.slane %v154, 4
    %v171 = vsel %vm169, %v164, %v170
    %v173 = vsub.f32 %v148, %v171
    %v174 = vsub.f32 %v151, %v162
    %v175 = vmul.f32 %v162, 2.0
    %v176 = vadd.f32 %v175, 0.0001
    %v177 = vmul.f32 %v174, 2.0
    %v178 = vadd.f32 %v177, 0.0009
    %v179 = vmul.f32 %v176, %v178
    %v180 = vrot.slane %v153, 6
    %v181 = vrot.slane %v154, 6
    %v182 = vsel %vm157, %v180, %v181
    %v184 = vadd.f32 %v153, %v182
    %v185 = vadd.f32 %v184, 0.0001
    %v187 = vrot.slane %v173, 6
    %v189 = vadd.f32 %v166, %v187
    %v190 = vadd.f32 %v167, %v187
    %v191 = vadd.f32 %v189, 0.0009
    %v192 = vadd.f32 %v190, 0.0009
    %v195 = vrot.slane %v191, 4
    %v196 = vrot.slane %v192, 4
    %v197 = vsel %vm169, %v195, %v196
    %v199 = vmul.f32 %v185, %v197
    %v200 = vrcp.pop %v199
    %v201 = vmul.f32 %v199, %v200
    %v202 = vsub.f32 1.0, %v201
    %v203 = vmul.f32 %v200, %v202
    %v204 = vadd.f32 %v200, %v203
    %vm205 = vweird.f32 %v199
    %vm206 = vweird.f32 %v200
    %vm207 = vmor %vm205, %vm206
    %v208 = vsel %vm207, %v200, %v204
    %v209 = vand.u32 2147483647, %v199
    %vm210 = vcmp.eq.f32.partialorder %v209, 8.507059e+37
    %v211 = vand.u32 %v199, 2147483648
    %v212 = vor.u32 1.1754944e-38, %v211
    %v213 = vsel %vm210, %v212, %v208
    %v214 = vmul.f32 %v179, %v213
    %vm215 = vcmask 390144
    %v216 = vsel %vm215, %v214, 0.0
    %217 = vadd.xlane.f32.xlu0 %v216
    %v218 = vpop.xlane.xlu0 %217
    %v219 = vrot.slane %v218, 4
    %v220 = vadd.f32 %v218, %v219
    %v221 = vrot.slane %v220, 2
    %v222 = vadd.f32 %v220, %v221
    %v223 = vrot.slane %v222, 1
    %v224 = vadd.f32 %v222, %v223
    %s225 = vtos %v224
    %v226 = vlaneseq
    %v227 = vand.u32 %v226, 127
    %vm228 = vcmp.eq.s32.totalorder %v227, 0
    %v229 = vstv %s35
    %v230 = vsel %vm228, %v229, 0.0
    %vm231 = vcmp.eq.s32.totalorder %v227, 1
    %v232 = vstv %s47
    %v233 = vsel %vm231, %v232, 0.0
    %v234 = vadd.f32 %v230, %v233
    %vm235 = vcmp.eq.s32.totalorder %v227, 2
    %v236 = vstv %s225
    %v237 = vsel %vm235, %v236, 0.0
    %v238 = vadd.f32 %v234, %v237
    %239 = vst [vmem:[#allocation2] sm:$0x1] %v238
    // Predicated region
    $region18: #{tpu_custom_call.1} parent=1 // pred_check
      _
    $region19: #{tpu_custom_call.1} parent=1 // pred_check_branch
      %241 = sbr.rel (0) target = $region21
    $region20: #{tpu_custom_call.1} parent=1 // pred_region
      %243 = vsyncadd [#allocation3], 0
      %s245 = sshll.u32 [#allocation2], 4
      %s246 = int_to_ptr.vmem [resolvable:$true] %s245
      %s247 = sshll.u32 %s4, 4
      %s248 = int_to_ptr.hbm [resolvable:$true] %s247
      %250 = dma.vmem_to_hbm [thread:$0]  %s246, 16, %s248, [#allocation3]
    $region21: #{tpu_custom_call.1} parent=1 // pred_fallthru
      _
    // Predicated region
    $region22: #{tpu_custom_call.1} parent=1 // pred_check
      _
    $region23: #{tpu_custom_call.1} parent=1 // pred_check_branch
      %252 = sbr.rel (0) target = $region25
    $region24: #{tpu_custom_call.1} parent=1 // pred_region
      %254 = dma.done [#allocation3], 16
    $region25: #{tpu_custom_call.1} parent=1 // pred_fallthru
      _
    %255 = vsyncpa [#allocation3], 1

</llo_original>
